<compile_context>
chip_gen: v7x
topology: tpu7x:2x2x1
jax: 0.10.0
libtpu: 0.0.40
codegen_flags: <defaults>
</compile_context>

<pallas_src>
import jax
import jax.numpy as jnp
from jax.experimental import pallas as pl
from jax.experimental.pallas import tpu as pltpu

K = 10  # hidden width from the PyTorch module


def generator_kernel(x_ref, w1_ref, b1_ref, w2_ref, b2_ref, w3_ref, b3_ref, o_ref):
    # One lane-dense batch tile of the fused MLP forward pass.
    # x_ref: (L, bm)   w1: (K, L)  b1: (K, 1)
    #                  w2: (K, K)  b2: (K, 1)
    #                  w3: (L, K)  b3: (L, 1)
    x = x_ref[...].astype(jnp.float32)

    # Layer 1: (K, L) @ (L, bm) -> (K, bm)
    h1 = jnp.maximum(
        jnp.dot(w1_ref[...], x, preferred_element_type=jnp.float32) + b1_ref[...],
        0.0,
    )

    # Layer 2: (K, K) @ (K, bm) -> (K, bm)
    h2 = jnp.maximum(
        jnp.dot(w2_ref[...], h1, preferred_element_type=jnp.float32) + b2_ref[...],
        0.0,
    )

    # Layer 3: (L, K) @ (K, bm) -> (L, bm)
    l3 = jnp.dot(w3_ref[...], h2, preferred_element_type=jnp.float32) + b3_ref[...]

    # Numerically-safe sigmoid (exp on the EUP); lane-dense unmasked store.
    o_ref[...] = jax.nn.sigmoid(l3).astype(o_ref.dtype)


def generator_forward(x, params, *, bm=512):
    """x: (B, L) float32. params: PyTorch-orientation weights (out, in) and
    biases reshaped to (out, 1).  Returns (B, L)."""
    B, L = x.shape
    w1, b1, w2, b2, w3, b3 = (
        params["w1"], params["b1"], params["w2"],
        params["b2"], params["w3"], params["b3"],
    )

    # Batch on the lane axis; pad up to a multiple of the batch tile.
    n_tiles = pl.cdiv(B, bm)
    b_pad = n_tiles * bm
    x_t = x.T  # (L, B)
    if b_pad != B:
        x_t = jnp.pad(x_t, ((0, 0), (0, b_pad - B)))

    param_bytes = sum(int(p.size) * 4 for p in (w1, b1, w2, b2, w3, b3))
    cost = pl.CostEstimate(
        flops=2 * b_pad * (L * K + K * K + K * L),
        transcendentals=b_pad * L,
        bytes_accessed=2 * b_pad * L * 4 + param_bytes,
    )

    out_t = pl.pallas_call(
        generator_kernel,
        out_shape=jax.ShapeDtypeStruct((L, b_pad), x.dtype),
        grid_spec=pltpu.PrefetchScalarGridSpec(
            num_scalar_prefetch=0,
            grid=(n_tiles,),
            in_specs=[
                # lane-dense batch tile of the (transposed) input
                pl.BlockSpec((L, bm), lambda i: (0, i)),
                # weights / biases: full arrays, constant block (VMEM-resident)
                pl.BlockSpec((K, L), lambda i: (0, 0)),
                pl.BlockSpec((K, 1), lambda i: (0, 0)),
                pl.BlockSpec((K, K), lambda i: (0, 0)),
                pl.BlockSpec((K, 1), lambda i: (0, 0)),
                pl.BlockSpec((L, K), lambda i: (0, 0)),
                pl.BlockSpec((L, 1), lambda i: (0, 0)),
            ],
            out_specs=pl.BlockSpec((L, bm), lambda i: (0, i)),
        ),
        compiler_params=pltpu.CompilerParams(
            dimension_semantics=("parallel",)
        ),
        cost_estimate=cost,
    )(x_t, w1, b1, w2, b2, w3, b3)

    # Drop padding, return to (B, L) convention.
    return out_t[:, :B].T
    # TODO(synk): optional bf16 I/O (halve HBM bytes) once callers accept the
    # looser tolerance; accumulation already happens in f32 on the MXU.


def init_params(key, input_length):
    """Deterministic init matching PyTorch nn.Linear: weight (out, in),
    bias (out,) with U(-1/sqrt(fan_in), 1/sqrt(fan_in)).  Biases are kept
    as (out, 1) columns so they broadcast across the lane (batch) axis."""
    ks = jax.random.split(key, 6)
    L = input_length

    def uniform(k_, shape, fan_in):
        bound = 1.0 / jnp.sqrt(fan_in)
        return jax.random.uniform(k_, shape, jnp.float32, -bound, bound)

    return {
        "w1": uniform(ks[0], (K, L), L), "b1": uniform(ks[1], (K, 1), L),
        "w2": uniform(ks[2], (K, K), K), "b2": uniform(ks[3], (K, 1), K),
        "w3": uniform(ks[4], (L, K), K), "b3": uniform(ks[5], (L, 1), K),
    }


def reference_forward(x, params):
    l1 = x @ params["w1"].T + params["b1"][:, 0]
    l2 = jnp.maximum(l1, 0.0) @ params["w2"].T + params["b2"][:, 0]
    l3 = jnp.maximum(l2, 0.0) @ params["w3"].T + params["b3"][:, 0]
    return jax.nn.sigmoid(l3)


if __name__ == "__main__":
    key = jax.random.PRNGKey(0)
    k_x, k_p = jax.random.split(key)

    # Small demo shapes: batch=300 (not a multiple of the tile -> exercises
    # cdiv + padding), input_length=16.  bm=128 gives 3 parallel grid steps.
    batch, input_length = 300, 16
    x = jax.random.normal(k_x, (batch, input_length), jnp.float32)
    params = init_params(k_p, input_length)

    out = generator_forward(x, params, bm=128)
    out = jax.block_until_ready(out)

    ref = reference_forward(x, params)
    assert out.shape == (batch, input_length)
    assert jnp.allclose(out, ref, atol=1e-5, rtol=1e-5), "mismatch vs reference"

    print("KERNEL_OK")
</pallas_src>

<mosaic_0001>
module attributes {stable_mosaic.version = 11 : i64} {
  func.func @generator_kernel(%arg0: i32, %arg1: memref<16x128xf32, #tpu.memory_space<vmem>>, %arg2: memref<10x16xf32, #tpu.memory_space<vmem>>, %arg3: memref<10x1xf32, #tpu.memory_space<vmem>>, %arg4: memref<10x10xf32, #tpu.memory_space<vmem>>, %arg5: memref<10x1xf32, #tpu.memory_space<vmem>>, %arg6: memref<16x10xf32, #tpu.memory_space<vmem>>, %arg7: memref<16x1xf32, #tpu.memory_space<vmem>>, %arg8: memref<16x128xf32, #tpu.memory_space<vmem>>) attributes {dimension_semantics = [#tpu.dimension_semantics<parallel>], iteration_bounds = array<i64: 3>, scalar_prefetch = 0 : i64, scratch_operands = 0 : i64, tpu.core_type = #tpu.core_type<tc>, window_params = [{transform_indices = @transform_0, window_bounds = array<i64: 16, 128>}, {pipeline_mode = #tpu.pipeline_mode<synchronous>, transform_indices = @transform_1, window_bounds = array<i64: 10, 16>}, {pipeline_mode = #tpu.pipeline_mode<synchronous>, transform_indices = @transform_2, window_bounds = array<i64: 10, 1>}, {pipeline_mode = #tpu.pipeline_mode<synchronous>, transform_indices = @transform_3, window_bounds = array<i64: 10, 10>}, {pipeline_mode = #tpu.pipeline_mode<synchronous>, transform_indices = @transform_4, window_bounds = array<i64: 10, 1>}, {pipeline_mode = #tpu.pipeline_mode<synchronous>, transform_indices = @transform_5, window_bounds = array<i64: 16, 10>}, {pipeline_mode = #tpu.pipeline_mode<synchronous>, transform_indices = @transform_6, window_bounds = array<i64: 16, 1>}, {transform_indices = @transform_7, window_bounds = array<i64: 16, 128>}]} {
    %c0 = arith.constant 0 : index
    %c0_0 = arith.constant 0 : index
    %0 = vector.load %arg1[%c0, %c0_0] : memref<16x128xf32, #tpu.memory_space<vmem>>, vector<16x128xf32>
    %c0_1 = arith.constant 0 : index
    %c0_2 = arith.constant 0 : index
    %1 = vector.load %arg2[%c0_1, %c0_2] : memref<10x16xf32, #tpu.memory_space<vmem>>, vector<10x16xf32>
    %cst = arith.constant dense<0.000000e+00> : vector<10x128xf32>
    %2 = tpu.matmul %1, %0, %cst {dimension_numbers = #tpu.dot_dimension_numbers<[1], [0], [0], [1], [0, 0, 1, 1], [], []>} : vector<10x16xf32>, vector<16x128xf32>, vector<10x128xf32> -> vector<10x128xf32>
    %c0_3 = arith.constant 0 : index
    %c0_4 = arith.constant 0 : index
    %3 = vector.load %arg3[%c0_3, %c0_4] : memref<10x1xf32, #tpu.memory_space<vmem>>, vector<10x1xf32>
    %4 = vector.broadcast %3 : vector<10x1xf32> to vector<10x128xf32>
    %5 = arith.addf %2, %4 : vector<10x128xf32>
    %cst_5 = arith.constant 0.000000e+00 : f32
    %6 = vector.broadcast %cst_5 : f32 to vector<10x128xf32>
    %7 = arith.maximumf %5, %6 : vector<10x128xf32>
    %c0_6 = arith.constant 0 : index
    %c0_7 = arith.constant 0 : index
    %8 = vector.load %arg4[%c0_6, %c0_7] : memref<10x10xf32, #tpu.memory_space<vmem>>, vector<10x10xf32>
    %cst_8 = arith.constant dense<0.000000e+00> : vector<10x128xf32>
    %9 = tpu.matmul %8, %7, %cst_8 {dimension_numbers = #tpu.dot_dimension_numbers<[1], [0], [0], [1], [0, 0, 1, 1], [], []>} : vector<10x10xf32>, vector<10x128xf32>, vector<10x128xf32> -> vector<10x128xf32>
    %c0_9 = arith.constant 0 : index
    %c0_10 = arith.constant 0 : index
    %10 = vector.load %arg5[%c0_9, %c0_10] : memref<10x1xf32, #tpu.memory_space<vmem>>, vector<10x1xf32>
    %11 = vector.broadcast %10 : vector<10x1xf32> to vector<10x128xf32>
    %12 = arith.addf %9, %11 : vector<10x128xf32>
    %cst_11 = arith.constant 0.000000e+00 : f32
    %13 = vector.broadcast %cst_11 : f32 to vector<10x128xf32>
    %14 = arith.maximumf %12, %13 : vector<10x128xf32>
    %c0_12 = arith.constant 0 : index
    %c0_13 = arith.constant 0 : index
    %15 = vector.load %arg6[%c0_12, %c0_13] : memref<16x10xf32, #tpu.memory_space<vmem>>, vector<16x10xf32>
    %cst_14 = arith.constant dense<0.000000e+00> : vector<16x128xf32>
    %16 = tpu.matmul %15, %14, %cst_14 {dimension_numbers = #tpu.dot_dimension_numbers<[1], [0], [0], [1], [0, 0, 1, 1], [], []>} : vector<16x10xf32>, vector<10x128xf32>, vector<16x128xf32> -> vector<16x128xf32>
    %c0_15 = arith.constant 0 : index
    %c0_16 = arith.constant 0 : index
    %17 = vector.load %arg7[%c0_15, %c0_16] : memref<16x1xf32, #tpu.memory_space<vmem>>, vector<16x1xf32>
    %18 = vector.broadcast %17 : vector<16x1xf32> to vector<16x128xf32>
    %19 = arith.addf %16, %18 : vector<16x128xf32>
    %20 = arith.negf %19 : vector<16x128xf32>
    %21 = math.exp %20 : vector<16x128xf32>
    %cst_17 = arith.constant 1.000000e+00 : f32
    %22 = vector.broadcast %cst_17 : f32 to vector<16x128xf32>
    %23 = arith.addf %22, %21 : vector<16x128xf32>
    %24 = arith.divf %22, %23 : vector<16x128xf32>
    %c0_18 = arith.constant 0 : index
    %c0_19 = arith.constant 0 : index
    %25 = vector.load %arg8[%c0_18, %c0_19] : memref<16x128xf32, #tpu.memory_space<vmem>>, vector<16x128xf32>
    tpu.vector_store %arg8[%c0_18, %c0_19], %24 {strides = array<i32>} : memref<16x128xf32, #tpu.memory_space<vmem>>, vector<16x128xf32>,
    return
  }
  func.func @transform_0(%arg0: i32) -> (i32, i32) {
    %c0_i32 = arith.constant 0 : i32
    %c0_i32_0 = arith.constant 0 : i32
    return %c0_i32, %arg0 : i32, i32
  }
  func.func @transform_1(%arg0: i32) -> (i32, i32) {
    %c0_i32 = arith.constant 0 : i32
    %c0_i32_0 = arith.constant 0 : i32
    %c0_i32_1 = arith.constant 0 : i32
    return %c0_i32, %c0_i32_0 : i32, i32
  }
  func.func @transform_2(%arg0: i32) -> (i32, i32) {
    %c0_i32 = arith.constant 0 : i32
    %c0_i32_0 = arith.constant 0 : i32
    %c0_i32_1 = arith.constant 0 : i32
    return %c0_i32, %c0_i32_0 : i32, i32
  }
  func.func @transform_3(%arg0: i32) -> (i32, i32) {
    %c0_i32 = arith.constant 0 : i32
    %c0_i32_0 = arith.constant 0 : i32
    %c0_i32_1 = arith.constant 0 : i32
    return %c0_i32, %c0_i32_0 : i32, i32
  }
  func.func @transform_4(%arg0: i32) -> (i32, i32) {
    %c0_i32 = arith.constant 0 : i32
    %c0_i32_0 = arith.constant 0 : i32
    %c0_i32_1 = arith.constant 0 : i32
    return %c0_i32, %c0_i32_0 : i32, i32
  }
  func.func @transform_5(%arg0: i32) -> (i32, i32) {
    %c0_i32 = arith.constant 0 : i32
    %c0_i32_0 = arith.constant 0 : i32
    %c0_i32_1 = arith.constant 0 : i32
    return %c0_i32, %c0_i32_0 : i32, i32
  }
  func.func @transform_6(%arg0: i32) -> (i32, i32) {
    %c0_i32 = arith.constant 0 : i32
    %c0_i32_0 = arith.constant 0 : i32
    %c0_i32_1 = arith.constant 0 : i32
    return %c0_i32, %c0_i32_0 : i32, i32
  }
  func.func @transform_7(%arg0: i32) -> (i32, i32) {
    %c0_i32 = arith.constant 0 : i32
    %c0_i32_0 = arith.constant 0 : i32
    return %c0_i32, %arg0 : i32, i32
  }
}

</mosaic_0001>

<llo_original>
// kernel: tpu_custom_call.1
$region0: #{tpu_custom_call.1}
  #allocation0 [shape = 'u32[]', space=smem, size = 0x4, offset = 0x4, fixed_abs, tag = 'smem constant byte address 0x4 - core index']
  #allocation1 [shape = 'u32[144,128]{1,0:T(1,128)}', space=vmem, size = 0x12000, scoped, tag = 'internal scratch']
  %s0 = inlined_call_operand.vmem [shape: f32[16,384], index: 0, kind: input, shape index: {}]
  %s1 = inlined_call_operand.hbm [shape: f32[10,16], index: 1, kind: input, shape index: {}]
  %s2 = inlined_call_operand.vmem [shape: f32[10,1], index: 2, kind: input, shape index: {}]
  %s3 = inlined_call_operand.hbm [shape: f32[10,10], index: 3, kind: input, shape index: {}]
  %s4 = inlined_call_operand.vmem [shape: f32[10,1], index: 4, kind: input, shape index: {}]
  %s5 = inlined_call_operand.vmem [shape: f32[16,10], index: 5, kind: input, shape index: {}]
  %s6 = inlined_call_operand.vmem [shape: f32[16,1], index: 6, kind: input, shape index: {}]
  %s7 = inlined_call_operand.hbm [shape: f32[16,384], index: 7, kind: output, shape index: {}]
  %s8 = sld [smem:[#allocation0]]
  $region107: #{tpu_custom_call.1} parent=0
    _
  %s10 = ssub.s32 1, %s8
  %s11 = scalar_select 0, %s10, %s8
  $region1: #{tpu_custom_call.1} parent=0
    #allocation2 [shape = 'u8[16384]{0}', space=vmem, size = 0x4000, scoped, tag = 'input window, operand 0']
    #allocation3 [shape = 'u8[8192]{0}', space=vmem, size = 0x2000, scoped, tag = 'input window, operand 1, single buffered']
    #allocation4 [shape = 's32[2]{0}', space=sflag, size = 0x8, scoped, tag = 'scoped memory for tpu_custom_call.1']
    #allocation5 [shape = 's32[2]{0}', space=sflag, size = 0x8, scoped, tag = 'scoped memory for tpu_custom_call.1']
    #allocation6 [shape = 'u8[8192]{0}', space=vmem, size = 0x2000, scoped, tag = 'input window, operand 3, single buffered']
    #allocation7 [shape = 's32[1]{0}', space=sflag, size = 0x4, scoped, tag = 'scoped memory for tpu_custom_call.1']
    #allocation8 [shape = 'u8[16384]{0}', space=vmem, size = 0x4000, scoped, tag = 'output window, operand 0']
    %12 = vsyncpa [#allocation4], 0
    %13 = vsyncpa [#allocation7], 0
    %14 = vsyncpa [#allocation5], 0
    %s15 = scalar_lea.sflag [#allocation5], 1
    %16 = vsyncpa %s15, 0
    loop: start=0, step=1, limit=5
    $region2: #{tpu_custom_call.1} parent=1 // loop_pre_header
      _
    $region3: #{tpu_custom_call.1} parent=1 // loop_header
      %s18 = sphi 0, %s22
      %p19 = scmp.ge.s32.totalorder %s18, 5
      %s28 = sphi 0, %s30
      %s31 = sphi 0, %s28
      %s32 = sphi 0, %s31
      %s48 = sphi 0, %s32
      %s52 = sphi 0, %s52
      %s54 = sphi 0, %s52
      %s55 = sphi 0, %s54
      %s69 = sphi 0, %s55
      %s73 = sphi 0, %s73
      %s75 = sphi 0, %s73
      %s76 = sphi 0, %s75
      %s90 = sphi 0, %s76
      %s94 = sphi 0, %s94
      %s96 = sphi 0, %s94
      %s97 = sphi 0, %s96
      %s111 = sphi 0, %s97
      %s115 = sphi 0, %s115
      %s117 = sphi 0, %s115
      %s118 = sphi 0, %s117
      %s132 = sphi 0, %s118
      %s136 = sphi 0, %s136
      %s138 = sphi 0, %s136
      %s139 = sphi 0, %s138
      %s153 = sphi 0, %s139
      %s157 = sphi 0, %s157
      %s159 = sphi 0, %s157
      %s160 = sphi 0, %s159
      %s174 = sphi 0, %s160
      %s180 = sphi 0, %s182
      %s183 = sphi 0, %s180
      %s184 = sphi 0, %s183
      %s200 = sphi 0, %s184
    $region4: #{tpu_custom_call.1} parent=1 // loop_header_branch
      %21 = sbr.rel (%p19) target = $region8
    $region5: #{tpu_custom_call.1} parent=1 // loop_body
      %s23 = ssub.s32 %s18, 1
      %s24 = ssub.s32 %s18, 2
      %s25 = sadd.s32 %s18, 1
      %s26 = ssub.s32 %s18, %s25
      %p27 = scmp.eq.s32.totalorder %s26, 0
      %s29 = sadd.s32 %s28, 1
      %s30 = scalar_select %p27, %s28, %s29
      %p33 = pneg %p27
      %p34 = scmp.eq.s32.totalorder %s18, 2
      %p35 = por %p33, %p34
      %p36 = scmp.ne.s32.totalorder %s28, %s31
      %p37 = scmp.eq.s32.totalorder %s18, 0
      %p38 = por %p36, %p37
      %p39 = scmp.ne.s32.totalorder %s28, %s31
      %p40 = scmp.eq.s32.totalorder %s23, 2
      %p41 = por %p39, %p40
      %p42 = scmp.ne.s32.totalorder %s31, %s32
      %p43 = scmp.eq.s32.totalorder %s23, 0
      %p44 = por %p42, %p43
      %p45 = scmp.ne.s32.totalorder %s31, %s32
      %p46 = scmp.eq.s32.totalorder %s24, 2
      %p47 = por %p45, %p46
      %p49 = scmp.ne.s32.totalorder %s32, %s48
      %p50 = scmp.eq.s32.totalorder %s24, 0
      %p51 = por %p49, %p50
      %s53 = sadd.s32 %s52, 1
      %p56 = scmp.eq.s32.totalorder %s18, 2
      %p57 = scmp.ne.s32.totalorder %s52, %s54
      %p58 = scmp.eq.s32.totalorder %s18, 0
      %p59 = por %p57, %p58
      %p60 = scmp.ne.s32.totalorder %s52, %s54
      %p61 = scmp.eq.s32.totalorder %s23, 2
      %p62 = por %p60, %p61
      %p63 = scmp.ne.s32.totalorder %s54, %s55
      %p64 = scmp.eq.s32.totalorder %s23, 0
      %p65 = por %p63, %p64
      %p66 = scmp.ne.s32.totalorder %s54, %s55
      %p67 = scmp.eq.s32.totalorder %s24, 2
      %p68 = por %p66, %p67
      %p70 = scmp.ne.s32.totalorder %s55, %s69
      %p71 = scmp.eq.s32.totalorder %s24, 0
      %p72 = por %p70, %p71
      %s74 = sadd.s32 %s73, 1
      %p77 = scmp.eq.s32.totalorder %s18, 2
      %p78 = scmp.ne.s32.totalorder %s73, %s75
      %p79 = scmp.eq.s32.totalorder %s18, 0
      %p80 = por %p78, %p79
      %p81 = scmp.ne.s32.totalorder %s73, %s75
      %p82 = scmp.eq.s32.totalorder %s23, 2
      %p83 = por %p81, %p82
      %p84 = scmp.ne.s32.totalorder %s75, %s76
      %p85 = scmp.eq.s32.totalorder %s23, 0
      %p86 = por %p84, %p85
      %p87 = scmp.ne.s32.totalorder %s75, %s76
      %p88 = scmp.eq.s32.totalorder %s24, 2
      %p89 = por %p87, %p88
      %p91 = scmp.ne.s32.totalorder %s76, %s90
      %p92 = scmp.eq.s32.totalorder %s24, 0
      %p93 = por %p91, %p92
      %s95 = sadd.s32 %s94, 1
      %p98 = scmp.eq.s32.totalorder %s18, 2
      %p99 = scmp.ne.s32.totalorder %s94, %s96
      %p100 = scmp.eq.s32.totalorder %s18, 0
      %p101 = por %p99, %p100
      %p102 = scmp.ne.s32.totalorder %s94, %s96
      %p103 = scmp.eq.s32.totalorder %s23, 2
      %p104 = por %p102, %p103
      %p105 = scmp.ne.s32.totalorder %s96, %s97
      %p106 = scmp.eq.s32.totalorder %s23, 0
      %p107 = por %p105, %p106
      %p108 = scmp.ne.s32.totalorder %s96, %s97
      %p109 = scmp.eq.s32.totalorder %s24, 2
      %p110 = por %p108, %p109
      %p112 = scmp.ne.s32.totalorder %s97, %s111
      %p113 = scmp.eq.s32.totalorder %s24, 0
      %p114 = por %p112, %p113
      %s116 = sadd.s32 %s115, 1
      %p119 = scmp.eq.s32.totalorder %s18, 2
      %p120 = scmp.ne.s32.totalorder %s115, %s117
      %p121 = scmp.eq.s32.totalorder %s18, 0
      %p122 = por %p120, %p121
      %p123 = scmp.ne.s32.totalorder %s115, %s117
      %p124 = scmp.eq.s32.totalorder %s23, 2
      %p125 = por %p123, %p124
      %p126 = scmp.ne.s32.totalorder %s117, %s118
      %p127 = scmp.eq.s32.totalorder %s23, 0
      %p128 = por %p126, %p127
      %p129 = scmp.ne.s32.totalorder %s117, %s118
      %p130 = scmp.eq.s32.totalorder %s24, 2
      %p131 = por %p129, %p130
      %p133 = scmp.ne.s32.totalorder %s118, %s132
      %p134 = scmp.eq.s32.totalorder %s24, 0
      %p135 = por %p133, %p134
      %s137 = sadd.s32 %s136, 1
      %p140 = scmp.eq.s32.totalorder %s18, 2
      %p141 = scmp.ne.s32.totalorder %s136, %s138
      %p142 = scmp.eq.s32.totalorder %s18, 0
      %p143 = por %p141, %p142
      %p144 = scmp.ne.s32.totalorder %s136, %s138
      %p145 = scmp.eq.s32.totalorder %s23, 2
      %p146 = por %p144, %p145
      %p147 = scmp.ne.s32.totalorder %s138, %s139
      %p148 = scmp.eq.s32.totalorder %s23, 0
      %p149 = por %p147, %p148
      %p150 = scmp.ne.s32.totalorder %s138, %s139
      %p151 = scmp.eq.s32.totalorder %s24, 2
      %p152 = por %p150, %p151
      %p154 = scmp.ne.s32.totalorder %s139, %s153
      %p155 = scmp.eq.s32.totalorder %s24, 0
      %p156 = por %p154, %p155
      %s158 = sadd.s32 %s157, 1
      %p161 = scmp.eq.s32.totalorder %s18, 2
      %p162 = scmp.ne.s32.totalorder %s157, %s159
      %p163 = scmp.eq.s32.totalorder %s18, 0
      %p164 = por %p162, %p163
      %p165 = scmp.ne.s32.totalorder %s157, %s159
      %p166 = scmp.eq.s32.totalorder %s23, 2
      %p167 = por %p165, %p166
      %p168 = scmp.ne.s32.totalorder %s159, %s160
      %p169 = scmp.eq.s32.totalorder %s23, 0
      %p170 = por %p168, %p169
      %p171 = scmp.ne.s32.totalorder %s159, %s160
      %p172 = scmp.eq.s32.totalorder %s24, 2
      %p173 = por %p171, %p172
      %p175 = scmp.ne.s32.totalorder %s160, %s174
      %p176 = scmp.eq.s32.totalorder %s24, 0
      %p177 = por %p175, %p176
      %s178 = ssub.s32 %s18, %s25
      %p179 = scmp.eq.s32.totalorder %s178, 0
      %s181 = sadd.s32 %s180, 1
      %s182 = scalar_select %p179, %s180, %s181
      %p185 = pneg %p179
      %p186 = scmp.eq.s32.totalorder %s18, 2
      %p187 = por %p185, %p186
      %p188 = scmp.ne.s32.totalorder %s180, %s183
      %p189 = scmp.eq.s32.totalorder %s18, 0
      %p190 = por %p188, %p189
      %p191 = scmp.ne.s32.totalorder %s180, %s183
      %p192 = scmp.eq.s32.totalorder %s23, 2
      %p193 = por %p191, %p192
      %p194 = scmp.ne.s32.totalorder %s183, %s184
      %p195 = scmp.eq.s32.totalorder %s23, 0
      %p196 = por %p194, %p195
      %p197 = scmp.ne.s32.totalorder %s183, %s184
      %p198 = scmp.eq.s32.totalorder %s24, 2
      %p199 = por %p197, %p198
      %p201 = scmp.ne.s32.totalorder %s184, %s200
      %p202 = scmp.eq.s32.totalorder %s24, 0
      %p203 = por %p201, %p202
      %p204 = scmp.le.s32.totalorder 1, %s18
      %p205 = scmp.lt.s32.totalorder %s18, 4
      %p206 = pnand %p204, %p205
      %p207 = pneg %p206
      // Predicated region
      $region9: #{tpu_custom_call.1} parent=5 // pred_check
        _
      $region10: #{tpu_custom_call.1} parent=5 // pred_check_branch
        %209 = sbr.rel (%p206) target = $region12
      $region11: #{tpu_custom_call.1} parent=5 // pred_region
        %s210 = ssub.s32 %s18, 1
        // Predicated region
        $region13: #{tpu_custom_call.1} parent=11 // pred_check
          %p211 = pneg %p65
        $region14: #{tpu_custom_call.1} parent=11 // pred_check_branch
          %213 = sbr.rel (%p211) target = $region16
        $region15: #{tpu_custom_call.1} parent=11 // pred_region
          %s215 = ssub.s32 256, 256
          %216 = vsyncadd [#allocation4], %s215
          %s217 = sshll.u32 [#allocation3], 4
          %s218 = int_to_ptr.vmem [resolvable:$true] %s217
          %223 = dma.hbm_to_vmem [thread:$0]  %s1, 256, %s218, [#allocation4], 128, 128, 8
        $region16: #{tpu_custom_call.1} parent=11 // pred_fallthru
          _
        // Predicated region
        $region17: #{tpu_custom_call.1} parent=11 // pred_check
          %p224 = pneg %p86
        $region18: #{tpu_custom_call.1} parent=11 // pred_check_branch
          %226 = sbr.rel (%p224) target = $region20
        $region19: #{tpu_custom_call.1} parent=11 // pred_region
          _
        $region20: #{tpu_custom_call.1} parent=11 // pred_fallthru
          _
        // Predicated region
        $region21: #{tpu_custom_call.1} parent=11 // pred_check
          %p227 = pneg %p107
        $region22: #{tpu_custom_call.1} parent=11 // pred_check_branch
          %229 = sbr.rel (%p227) target = $region24
        $region23: #{tpu_custom_call.1} parent=11 // pred_region
          %s231 = ssub.s32 256, 256
          %232 = vsyncadd [#allocation7], %s231
          %s233 = sshll.u32 [#allocation6], 4
          %s234 = int_to_ptr.vmem [resolvable:$true] %s233
          %239 = dma.hbm_to_vmem [thread:$0]  %s3, 256, %s234, [#allocation7], 128, 128, 8
        $region24: #{tpu_custom_call.1} parent=11 // pred_fallthru
          _
        // Predicated region
        $region25: #{tpu_custom_call.1} parent=11 // pred_check
          %p240 = pneg %p128
        $region26: #{tpu_custom_call.1} parent=11 // pred_check_branch
          %242 = sbr.rel (%p240) target = $region28
        $region27: #{tpu_custom_call.1} parent=11 // pred_region
          _
        $region28: #{tpu_custom_call.1} parent=11 // pred_fallthru
          _
        // Predicated region
        $region29: #{tpu_custom_call.1} parent=11 // pred_check
          %p243 = pneg %p149
        $region30: #{tpu_custom_call.1} parent=11 // pred_check_branch
          %245 = sbr.rel (%p243) target = $region32
        $region31: #{tpu_custom_call.1} parent=11 // pred_region
          _
        $region32: #{tpu_custom_call.1} parent=11 // pred_fallthru
          _
        // Predicated region
        $region33: #{tpu_custom_call.1} parent=11 // pred_check
          %p246 = pneg %p170
        $region34: #{tpu_custom_call.1} parent=11 // pred_check_branch
          %248 = sbr.rel (%p246) target = $region36
        $region35: #{tpu_custom_call.1} parent=11 // pred_region
          _
        $region36: #{tpu_custom_call.1} parent=11 // pred_fallthru
          _
      $region12: #{tpu_custom_call.1} parent=5 // pred_fallthru
        _
      %p249 = scmp.lt.s32.totalorder %s18, 3
      // Predicated region
      $region37: #{tpu_custom_call.1} parent=5 // pred_check
        %p250 = pneg %p249
      $region38: #{tpu_custom_call.1} parent=5 // pred_check_branch
        %252 = sbr.rel (%p250) target = $region40
      $region39: #{tpu_custom_call.1} parent=5 // pred_region
        // Predicated region
        $region41: #{tpu_custom_call.1} parent=39 // pred_check
          %p253 = pneg %p38
        $region42: #{tpu_custom_call.1} parent=39 // pred_check_branch
          %255 = sbr.rel (%p253) target = $region44
        $region43: #{tpu_custom_call.1} parent=39 // pred_region
          %s256 = sand.u32 %s28, 1
          %s257 = sand.u32 %s28, 1
          %s258 = smul.addr %s257, 16
          %s259 = scalar_lea.vmem [#allocation2], %s258
          %s260 = smul.addr %s18, 8
          %s261 = scalar_lea.vmem %s0, %s260
          // Predicated region
          $region45: #{tpu_custom_call.1} parent=43 // pred_check
            _
          $region46: #{tpu_custom_call.1} parent=43 // pred_check_branch
            %263 = sbr.rel (0) target = $region48
          $region47: #{tpu_custom_call.1} parent=43 // pred_region
            // Predicated region
            $region49: #{tpu_custom_call.1} parent=47 // pred_check
              _
            $region50: #{tpu_custom_call.1} parent=47 // pred_check_branch
              %265 = sbr.rel (0) target = $region52
            $region51: #{tpu_custom_call.1} parent=47 // pred_region
              // Predicated region
              $region64: #{tpu_custom_call.1} parent=51 // pred_check
                _
              $region65: #{tpu_custom_call.1} parent=51 // pred_check_branch
                %282 = sbr.rel (0) target = $region67
              $region66: #{tpu_custom_call.1} parent=51 // pred_region
                loop: start=0, step=1, limit=1
                $region68: #{tpu_custom_call.1} parent=66 // loop_pre_header
                  _
                $region69: #{tpu_custom_call.1} parent=66 // loop_header
                  %s284 = sphi 0, %s288
                  %p285 = scmp.ge.s32.totalorder %s284, 1
                  %s289 = sphi %s261, %s261
                  %s290 = sphi %s259, %s259
                $region70: #{tpu_custom_call.1} parent=66 // loop_header_branch
                  %287 = sbr.rel (%p285) target = $region74
                $region71: #{tpu_custom_call.1} parent=66 // loop_body
                  %v291 = vld [vmem:[%s289] sm:$0xff]
                  %292 = vst [vmem:[%s290] sm:$0xff] %v291
                  %v293 = vld [vmem:[%s289 + $0x18] sm:$0xff]
                  %294 = vst [vmem:[%s290 + $0x8] sm:$0xff] %v293
                $region72: #{tpu_custom_call.1} parent=66 // loop_footer
                  %s288 = sadd.s32 1, %s284
                $region73: #{tpu_custom_call.1} parent=66 // loop_footer_branch
                  %283 = sbr.rel target = $region69
                $region74: #{tpu_custom_call.1} parent=66 // loop_exit
                  _
              $region67: #{tpu_custom_call.1} parent=51 // pred_fallthru
                _
              // Predicated region
              $region75: #{tpu_custom_call.1} parent=51 // pred_check
                _
              $region76: #{tpu_custom_call.1} parent=51 // pred_check_branch
                %296 = sbr.rel target = $region78
              $region77: #{tpu_custom_call.1} parent=51 // pred_region
                _
              $region78: #{tpu_custom_call.1} parent=51 // pred_fallthru
                _
            $region52: #{tpu_custom_call.1} parent=47 // pred_fallthru
              _
            // Predicated region
            $region53: #{tpu_custom_call.1} parent=47 // pred_check
              _
            $region54: #{tpu_custom_call.1} parent=47 // pred_check_branch
              %267 = sbr.rel target = $region56
            $region55: #{tpu_custom_call.1} parent=47 // pred_region
              loop: start=0, step=1, limit=1
              $region57: #{tpu_custom_call.1} parent=55 // loop_pre_header
                _
              $region58: #{tpu_custom_call.1} parent=55 // loop_header
                %s270 = sphi 0, %s274
                %p271 = scmp.ge.s32.totalorder %s270, 1
                %s275 = sphi %s261, %s261
                %s276 = sphi %s259, %s259
              $region59: #{tpu_custom_call.1} parent=55 // loop_header_branch
                %273 = sbr.rel (%p271) target = $region63
              $region60: #{tpu_custom_call.1} parent=55 // loop_body
                %v277 = vld [vmem:[%s275] sm:$0xff]
                %278 = vst [vmem:[%s276] sm:$0xff] %v277
                %v279 = vld [vmem:[%s275 + $0x18] sm:$0xff]
                %280 = vst [vmem:[%s276 + $0x8] sm:$0xff] %v279
              $region61: #{tpu_custom_call.1} parent=55 // loop_footer
                %s274 = sadd.s32 1, %s270
              $region62: #{tpu_custom_call.1} parent=55 // loop_footer_branch
                %269 = sbr.rel target = $region58
              $region63: #{tpu_custom_call.1} parent=55 // loop_exit
                _
            $region56: #{tpu_custom_call.1} parent=47 // pred_fallthru
              _
          $region48: #{tpu_custom_call.1} parent=43 // pred_fallthru
            _
          %297 = vnop
        $region44: #{tpu_custom_call.1} parent=39 // pred_fallthru
          _
      $region40: #{tpu_custom_call.1} parent=5 // pred_fallthru
        _
      %p298 = scmp.le.s32.totalorder 1, %s18
      %p299 = scmp.lt.s32.totalorder %s18, 4
      %p300 = pnand %p298, %p299
      %p301 = pneg %p300
      // Predicated region
      $region79: #{tpu_custom_call.1} parent=5 // pred_check
        _
      $region80: #{tpu_custom_call.1} parent=5 // pred_check_branch
        %303 = sbr.rel (%p300) target = $region82
      $region81: #{tpu_custom_call.1} parent=5 // pred_region
        %s304 = ssub.s32 %s18, 1
        %s305 = sand.u32 %s31, 1
        %s306 = sand.u32 %s31, 1
        %s307 = smul.addr %s306, 16
        %s308 = scalar_lea.vmem [#allocation2], %s307
        // Predicated region
        $region83: #{tpu_custom_call.1} parent=81 // pred_check
          %p309 = pneg %p44
        $region84: #{tpu_custom_call.1} parent=81 // pred_check_branch
          %311 = sbr.rel (%p309) target = $region86
        $region85: #{tpu_custom_call.1} parent=81 // pred_region
          _
        $region86: #{tpu_custom_call.1} parent=81 // pred_fallthru
          _
        // Predicated region
        $region87: #{tpu_custom_call.1} parent=81 // pred_check
          %p312 = pneg %p65
        $region88: #{tpu_custom_call.1} parent=81 // pred_check_branch
          %314 = sbr.rel (%p312) target = $region90
        $region89: #{tpu_custom_call.1} parent=81 // pred_region
          %315 = dma.done [#allocation4], 256
        $region90: #{tpu_custom_call.1} parent=81 // pred_fallthru
          _
        // Predicated region
        $region91: #{tpu_custom_call.1} parent=81 // pred_check
          %p316 = pneg %p107
        $region92: #{tpu_custom_call.1} parent=81 // pred_check_branch
          %318 = sbr.rel (%p316) target = $region94
        $region93: #{tpu_custom_call.1} parent=81 // pred_region
          %319 = dma.done [#allocation7], 256
        $region94: #{tpu_custom_call.1} parent=81 // pred_fallthru
          _
        %s320 = sand.u32 %s31, 1
        %s321 = sand.u32 %s31, 1
        %s322 = smul.addr %s321, 16
        %s323 = scalar_lea.vmem [#allocation2], %s322
        %p324 = pneg %p44
        %p325 = pneg %p41
        %p326 = pneg %p65
        %p327 = pneg %p62
        %p328 = pneg %p86
        %p329 = pneg %p83
        %p330 = pneg %p107
        %p331 = pneg %p104
        %p332 = pneg %p128
        %p333 = pneg %p125
        %p334 = pneg %p149
        %p335 = pneg %p146
        %p336 = pneg %p170
        %p337 = pneg %p167
        %p338 = pneg %p196
        %p339 = pneg %p193
        %s340 = sand.u32 %s183, 1
        %s341 = scalar_lea.sflag [#allocation5], %s340
        %s342 = sand.u32 %s183, 1
        %s343 = smul.addr %s342, 16
        %s344 = scalar_lea.vmem [#allocation8], %s343
        %v345 = vld [vmem:[%s308] sm:$0xff]
        %v346 = vld [vmem:[%s308 + $0x8] sm:$0xff]
        %v347 = vld [vmem:[#allocation3] sm:$0xff]
        %v348 = vld [vmem:[#allocation3 + $0x8] sm:$0x3]
        %v349 = vld [vmem:[%s2] sm:$0xff]
        %v350 = vld [vmem:[%s2 + $0x8] sm:$0x3]
        %352 = vset.pattern.permute.xlu0 0
        %353 = vperm.xlu0 %352, %v349
        %v354 = vpop.permute.xlu0 %353
        %357 = vset.pattern.permute.xlu0 0
        %358 = vperm.xlu0 %357, %v350
        %v359 = vpop.permute.xlu0 %358
        %vm361 = vcmask 130048
        %v363 = vsel %vm361, %v347, 0
        %v366 = vsel %vm361, %v348, 0
        %368 = vmatprep.subr.mxu0 0.0
        %369 = vmatpush1.msra.mxu0 %v345
        %370 = vmatprep.subr.mxu0 0.0
        %371 = vmatpush1.msra.mxu0 %v346
        %372 = vmatprep.subr.mxu0 0.0
        %373 = vmatpush1.msra.mxu0 0.0
        %374 = vmatprep.subr.mxu0 0.0
        %375 = vmatpush1.msra.mxu0 0.0
        %376 = vmatprep.subr.mxu0 0.0
        %377 = vmatpush1.msra.mxu0 0.0
        %378 = vmatprep.subr.mxu0 0.0
        %379 = vmatpush1.msra.mxu0 0.0
        %380 = vmatprep.subr.mxu0 0.0
        %381 = vmatpush1.msra.mxu0 0.0
        %382 = vmatprep.subr.mxu0 0.0
        %383 = vmatpush1.msra.mxu0 0.0
        %384 = vmatprep.subr.mxu0 0.0
        %385 = vmatpush1.msra.mxu0 0.0
        %386 = vmatprep.subr.mxu0 0.0
        %387 = vmatpush1.msra.mxu0 0.0
        %388 = vmatprep.subr.mxu0 0.0
        %389 = vmatpush1.msra.mxu0 0.0
        %390 = vmatprep.subr.mxu0 0.0
        %391 = vmatpush1.msra.mxu0 0.0
        %392 = vmatprep.subr.mxu0 0.0
        %393 = vmatpush1.msra.mxu0 0.0
        %394 = vmatprep.subr.mxu0 0.0
        %395 = vmatpush1.msra.mxu0 0.0
        %396 = vmatprep.subr.mxu0 0.0
        %397 = vmatpush1.msra.mxu0 0.0
        %398 = vmatprep.subr.mxu0 0.0
        %399 = vmatpush1.msra.mxu0 0.0
        %400 = vmatprep.subr.mxu0 0.0
        %401 = vmatpush1.msra.mxu0 0.0
        %402 = vmatprep.subr.mxu0 0.0
        %403 = vmatpush1.msra.mxu0 0.0
        %404 = vmatprep.subr.mxu0 0.0
        %405 = vmatpush1.msra.mxu0 0.0
        %406 = vmatprep.subr.mxu0 0.0
        %407 = vmatpush1.msra.mxu0 0.0
        %408 = vmatprep.subr.mxu0 0.0
        %409 = vmatpush1.msra.mxu0 0.0
        %410 = vmatprep.subr.mxu0 0.0
        %411 = vmatpush1.msra.mxu0 0.0
        %412 = vmatprep.subr.mxu0 0.0
        %413 = vmatpush1.msra.mxu0 0.0
        %414 = vmatprep.subr.mxu0 0.0
        %415 = vmatpush1.msra.mxu0 0.0
        %416 = vmatprep.subr.mxu0 0.0
        %417 = vmatpush1.msra.mxu0 0.0
        %418 = vmatprep.subr.mxu0 0.0
        %419 = vmatpush1.msra.mxu0 0.0
        %420 = vmatprep.subr.mxu0 0.0
        %421 = vmatpush1.msra.mxu0 0.0
        %422 = vmatprep.subr.mxu0 0.0
        %423 = vmatpush1.msra.mxu0 0.0
        %424 = vmatprep.subr.mxu0 0.0
        %425 = vmatpush1.msra.mxu0 0.0
        %426 = vmatprep.subr.mxu0 0.0
        %427 = vmatpush1.msra.mxu0 0.0
        %428 = vmatprep.subr.mxu0 0.0
        %429 = vmatpush1.msra.mxu0 0.0
        %430 = vmatprep.subr.mxu0 0.0
        %431 = vmatpush1.msra.mxu0 0.0
        %432 = vmatprep.mubr.f32.mxu0 0.0
        %433 = vmatmul.mubr.f32.gmra.mrb[0].mxu0 %v363
        %v434 = vpop.f32.mrb[0].mxu0
        %v435 = vadd.f32 %v354, %v434
        %v436 = vpop.f32.mrb[0].mxu0
        %437 = vmatprep.mubr.f32.mxu0 0.0
        %438 = vmatmul.mubr.f32.gmra.mrb[0].mxu0 %v366
        %v439 = vpop.f32.mrb[0].mxu0
        %v440 = vadd.f32 %v359, %v439
        %v441 = vpop.f32.mrb[0].mxu0
        %442 = vdwg.mxu0
        %v443 = vmax.f32 %v435, 0.0
        %v444 = vmax.f32 %v440, 0.0
        %v445 = vld [vmem:[#allocation6] sm:$0xff]
        %v446 = vld [vmem:[#allocation6 + $0x8] sm:$0x3]
        %v447 = vld [vmem:[%s4] sm:$0xff]
        %v448 = vld [vmem:[%s4 + $0x8] sm:$0x3]
        %450 = vset.pattern.permute.xlu0 0
        %451 = vperm.xlu0 %450, %v447
        %v452 = vpop.permute.xlu0 %451
        %455 = vset.pattern.permute.xlu0 0
        %456 = vperm.xlu0 %455, %v448
        %v457 = vpop.permute.xlu0 %456
        %vm459 = vcmask 80896
        %v461 = vsel %vm459, %v445, 0
        %v464 = vsel %vm459, %v446, 0
        %vm466 = vcmask 1041408
        %v468 = vsel %vm466, %v444, 0
        %470 = vmatprep.subr.mxu0 0.0
        %471 = vmatpush1.msra.mxu0 %v443
        %472 = vmatprep.subr.mxu0 0.0
        %473 = vmatpush1.msra.mxu0 %v468
        %474 = vmatprep.subr.mxu0 0.0
        %475 = vmatpush1.msra.mxu0 0.0
        %476 = vmatprep.subr.mxu0 0.0
        %477 = vmatpush1.msra.mxu0 0.0
        %478 = vmatprep.subr.mxu0 0.0
        %479 = vmatpush1.msra.mxu0 0.0
        %480 = vmatprep.subr.mxu0 0.0
        %481 = vmatpush1.msra.mxu0 0.0
        %482 = vmatprep.subr.mxu0 0.0
        %483 = vmatpush1.msra.mxu0 0.0
        %484 = vmatprep.subr.mxu0 0.0
        %485 = vmatpush1.msra.mxu0 0.0
        %486 = vmatprep.subr.mxu0 0.0
        %487 = vmatpush1.msra.mxu0 0.0
        %488 = vmatprep.subr.mxu0 0.0
        %489 = vmatpush1.msra.mxu0 0.0
        %490 = vmatprep.subr.mxu0 0.0
        %491 = vmatpush1.msra.mxu0 0.0
        %492 = vmatprep.subr.mxu0 0.0
        %493 = vmatpush1.msra.mxu0 0.0
        %494 = vmatprep.subr.mxu0 0.0
        %495 = vmatpush1.msra.mxu0 0.0
        %496 = vmatprep.subr.mxu0 0.0
        %497 = vmatpush1.msra.mxu0 0.0
        %498 = vmatprep.subr.mxu0 0.0
        %499 = vmatpush1.msra.mxu0 0.0
        %500 = vmatprep.subr.mxu0 0.0
        %501 = vmatpush1.msra.mxu0 0.0
        %502 = vmatprep.subr.mxu0 0.0
        %503 = vmatpush1.msra.mxu0 0.0
        %504 = vmatprep.subr.mxu0 0.0
        %505 = vmatpush1.msra.mxu0 0.0
        %506 = vmatprep.subr.mxu0 0.0
        %507 = vmatpush1.msra.mxu0 0.0
        %508 = vmatprep.subr.mxu0 0.0
        %509 = vmatpush1.msra.mxu0 0.0
        %510 = vmatprep.subr.mxu0 0.0
        %511 = vmatpush1.msra.mxu0 0.0
        %512 = vmatprep.subr.mxu0 0.0
        %513 = vmatpush1.msra.mxu0 0.0
        %514 = vmatprep.subr.mxu0 0.0
        %515 = vmatpush1.msra.mxu0 0.0
        %516 = vmatprep.subr.mxu0 0.0
        %517 = vmatpush1.msra.mxu0 0.0
        %518 = vmatprep.subr.mxu0 0.0
        %519 = vmatpush1.msra.mxu0 0.0
        %520 = vmatprep.subr.mxu0 0.0
        %521 = vmatpush1.msra.mxu0 0.0
        %522 = vmatprep.subr.mxu0 0.0
        %523 = vmatpush1.msra.mxu0 0.0
        %524 = vmatprep.subr.mxu0 0.0
        %525 = vmatpush1.msra.mxu0 0.0
        %526 = vmatprep.subr.mxu0 0.0
        %527 = vmatpush1.msra.mxu0 0.0
        %528 = vmatprep.subr.mxu0 0.0
        %529 = vmatpush1.msra.mxu0 0.0
        %530 = vmatprep.subr.mxu0 0.0
        %531 = vmatpush1.msra.mxu0 0.0
        %532 = vmatprep.subr.mxu0 0.0
        %533 = vmatpush1.msra.mxu0 0.0
        %534 = vmatprep.mubr.f32.mxu0 0.0
        %535 = vmatmul.mubr.f32.gmra.mrb[0].mxu0 %v461
        %v536 = vpop.f32.mrb[0].mxu0
        %v537 = vadd.f32 %v452, %v536
        %v538 = vpop.f32.mrb[0].mxu0
        %539 = vmatprep.mubr.f32.mxu0 0.0
        %540 = vmatmul.mubr.f32.gmra.mrb[0].mxu0 %v464
        %v541 = vpop.f32.mrb[0].mxu0
        %v542 = vadd.f32 %v457, %v541
        %v543 = vpop.f32.mrb[0].mxu0
        %544 = vdwg.mxu0
        %v545 = vmax.f32 %v537, 0.0
        %v546 = vmax.f32 %v542, 0.0
        %v547 = vld [vmem:[%s5] sm:$0xff]
        %v548 = vld [vmem:[%s5 + $0x8] sm:$0xff]
        %v549 = vld [vmem:[%s6] sm:$0xff]
        %v550 = vld [vmem:[%s6 + $0x8] sm:$0xff]
        %552 = vset.pattern.permute.xlu0 0
        %553 = vperm.xlu0 %552, %v549
        %v554 = vpop.permute.xlu0 %553
        %557 = vset.pattern.permute.xlu0 0
        %558 = vperm.xlu0 %557, %v550
        %v559 = vpop.permute.xlu0 %558
        %v562 = vsel %vm459, %v547, 0
        %v565 = vsel %vm459, %v548, 0
        %v568 = vsel %vm466, %v546, 0
        %570 = vmatprep.subr.mxu0 0.0
        %571 = vmatpush1.msra.mxu0 %v545
        %572 = vmatprep.subr.mxu0 0.0
        %573 = vmatpush1.msra.mxu0 %v568
        %574 = vmatprep.subr.mxu0 0.0
        %575 = vmatpush1.msra.mxu0 0.0
        %576 = vmatprep.subr.mxu0 0.0
        %577 = vmatpush1.msra.mxu0 0.0
        %578 = vmatprep.subr.mxu0 0.0
        %579 = vmatpush1.msra.mxu0 0.0
        %580 = vmatprep.subr.mxu0 0.0
        %581 = vmatpush1.msra.mxu0 0.0
        %582 = vmatprep.subr.mxu0 0.0
        %583 = vmatpush1.msra.mxu0 0.0
        %584 = vmatprep.subr.mxu0 0.0
        %585 = vmatpush1.msra.mxu0 0.0
        %586 = vmatprep.subr.mxu0 0.0
        %587 = vmatpush1.msra.mxu0 0.0
        %588 = vmatprep.subr.mxu0 0.0
        %589 = vmatpush1.msra.mxu0 0.0
        %590 = vmatprep.subr.mxu0 0.0
        %591 = vmatpush1.msra.mxu0 0.0
        %592 = vmatprep.subr.mxu0 0.0
        %593 = vmatpush1.msra.mxu0 0.0
        %594 = vmatprep.subr.mxu0 0.0
        %595 = vmatpush1.msra.mxu0 0.0
        %596 = vmatprep.subr.mxu0 0.0
        %597 = vmatpush1.msra.mxu0 0.0
        %598 = vmatprep.subr.mxu0 0.0
        %599 = vmatpush1.msra.mxu0 0.0
        %600 = vmatprep.subr.mxu0 0.0
        %601 = vmatpush1.msra.mxu0 0.0
        %602 = vmatprep.subr.mxu0 0.0
        %603 = vmatpush1.msra.mxu0 0.0
        %604 = vmatprep.subr.mxu0 0.0
        %605 = vmatpush1.msra.mxu0 0.0
        %606 = vmatprep.subr.mxu0 0.0
        %607 = vmatpush1.msra.mxu0 0.0
        %608 = vmatprep.subr.mxu0 0.0
        %609 = vmatpush1.msra.mxu0 0.0
        %610 = vmatprep.subr.mxu0 0.0
        %611 = vmatpush1.msra.mxu0 0.0
        %612 = vmatprep.subr.mxu0 0.0
        %613 = vmatpush1.msra.mxu0 0.0
        %614 = vmatprep.subr.mxu0 0.0
        %615 = vmatpush1.msra.mxu0 0.0
        %616 = vmatprep.subr.mxu0 0.0
        %617 = vmatpush1.msra.mxu0 0.0
        %618 = vmatprep.subr.mxu0 0.0
        %619 = vmatpush1.msra.mxu0 0.0
        %620 = vmatprep.subr.mxu0 0.0
        %621 = vmatpush1.msra.mxu0 0.0
        %622 = vmatprep.subr.mxu0 0.0
        %623 = vmatpush1.msra.mxu0 0.0
        %624 = vmatprep.subr.mxu0 0.0
        %625 = vmatpush1.msra.mxu0 0.0
        %626 = vmatprep.subr.mxu0 0.0
        %627 = vmatpush1.msra.mxu0 0.0
        %628 = vmatprep.subr.mxu0 0.0
        %629 = vmatpush1.msra.mxu0 0.0
        %630 = vmatprep.subr.mxu0 0.0
        %631 = vmatpush1.msra.mxu0 0.0
        %632 = vmatprep.subr.mxu0 0.0
        %633 = vmatpush1.msra.mxu0 0.0
        %634 = vmatprep.mubr.f32.mxu0 0.0
        %635 = vmatmul.mubr.f32.gmra.mrb[0].mxu0 %v562
        %v636 = vpop.f32.mrb[0].mxu0
        %v637 = vadd.f32 %v554, %v636
        %v638 = vpop.f32.mrb[0].mxu0
        %639 = vmatprep.mubr.f32.mxu0 0.0
        %640 = vmatmul.mubr.f32.gmra.mrb[0].mxu0 %v565
        %v641 = vpop.f32.mrb[0].mxu0
        %v642 = vadd.f32 %v559, %v641
        %v643 = vpop.f32.mrb[0].mxu0
        %644 = vdwg.mxu0
        %v645 = vxor.u32 %v637, 2147483648
        %v646 = vxor.u32 %v642, 2147483648
        %v647 = vmul.f32 %v645, 1.442695
        %v648 = vpow.pop %v647
        %v649 = vmul.f32 %v646, 1.442695
        %v650 = vpow.pop %v649
        %v651 = vadd.f32 %v648, 1.0
        %v652 = vadd.f32 %v650, 1.0
        %v653 = vrcp.pop %v651
        %v654 = vmul.f32 1.0, %v653
        %v655 = vrcp.pop %v652
        %v656 = vmul.f32 1.0, %v655
        %657 = vst [vmem:[%s344] sm:$0xff] %v654
        %658 = vst [vmem:[%s344 + $0x8] sm:$0xff] %v656
        %s659 = sand.u32 %s183, 1
        %s660 = scalar_lea.sflag [#allocation5], %s659
        %s661 = sand.u32 %s183, 1
        %s662 = smul.addr %s661, 16
        %s663 = scalar_lea.vmem [#allocation8], %s662
        // Predicated region
        $region95: #{tpu_custom_call.1} parent=81 // pred_check
          %p664 = pneg %p193
        $region96: #{tpu_custom_call.1} parent=81 // pred_check_branch
          %666 = sbr.rel (%p664) target = $region98
        $region97: #{tpu_custom_call.1} parent=81 // pred_region
          %s668 = ssub.s32 256, 256
          %669 = vsyncadd %s660, %s668
          %s670 = smul.addr %s23, 128
          %s671 = scalar_lea.hbm %s7, %s670
          %s672 = sshll.u32 %s663, 4
          %s673 = int_to_ptr.vmem [resolvable:$true] %s672
          %678 = dma.vmem_to_hbm [thread:$0]  %s673, 256, %s671, %s660, 128, 384, 8
        $region98: #{tpu_custom_call.1} parent=81 // pred_fallthru
          _
      $region82: #{tpu_custom_call.1} parent=5 // pred_fallthru
        _
      %p679 = scmp.le.s32.totalorder 2, %s18
      // Predicated region
      $region99: #{tpu_custom_call.1} parent=5 // pred_check
        %p680 = pneg %p679
      $region100: #{tpu_custom_call.1} parent=5 // pred_check_branch
        %682 = sbr.rel (%p680) target = $region102
      $region101: #{tpu_custom_call.1} parent=5 // pred_region
        %s683 = ssub.s32 %s18, 2
        // Predicated region
        $region103: #{tpu_custom_call.1} parent=101 // pred_check
          %p684 = pneg %p199
        $region104: #{tpu_custom_call.1} parent=101 // pred_check_branch
          %686 = sbr.rel (%p684) target = $region106
        $region105: #{tpu_custom_call.1} parent=101 // pred_region
          %s687 = sand.u32 %s184, 1
          %s688 = scalar_lea.sflag [#allocation5], %s687
          %s689 = sand.u32 %s184, 1
          %s690 = smul.addr %s689, 16
          %s691 = scalar_lea.vmem [#allocation8], %s690
          %692 = dma.done %s688, 256
        $region106: #{tpu_custom_call.1} parent=101 // pred_fallthru
          _
      $region102: #{tpu_custom_call.1} parent=5 // pred_fallthru
        _
    $region6: #{tpu_custom_call.1} parent=1 // loop_footer
      %s22 = sadd.s32 1, %s18
    $region7: #{tpu_custom_call.1} parent=1 // loop_footer_branch
      %17 = sbr.rel target = $region3
    $region8: #{tpu_custom_call.1} parent=1 // loop_exit
      _
    %693 = vsyncpa [#allocation4], 1
    %s694 = scalar_lea.sflag [#allocation4], 1
    %695 = vsyncpa %s694, 1
    %696 = vsyncpa [#allocation7], 1
    %697 = vsyncpa [#allocation5], 1
    %s698 = scalar_lea.sflag [#allocation5], 1
    %699 = vsyncpa %s698, 1

</llo_original>
